<compile_context>
chip_gen: v6e
topology: v6e:2x2x1
jax: 0.10.0
libtpu: 0.0.40
codegen_flags: <defaults>
</compile_context>

<pallas_src>
import functools

import jax
import jax.numpy as jnp
from jax import lax
from jax.experimental import pallas as pl
from jax.experimental.pallas import tpu as pltpu

_MASK_VALUE = -1e30  # large finite negative (safe with exp / softmax)


def _pick_q_tile(t, cap=256):
    """q-tile size: full T when small (single grid step per batch), else a divisor."""
    if t <= cap:
        return t
    for p in (256, 128, 64, 32, 16, 8):
        if t % p == 0:
            return p
    return t


def _fused_head_kernel(x_ref, w_ref, o_ref, *, tq, n_q, head_size, scale,
                       compute_dtype):
    """One grid step: output rows [qi*tq, qi*tq + tq) of one batch element.

    x_ref: (1, T, C)  full sequence for this batch element.  Its block index
                      only changes with the batch axis, so the buffer stays
                      VMEM-resident across q tiles (no re-DMA).
    w_ref: (C, 3H)    fused [Wq | Wk | Wv] projection weight (resident).
    o_ref: (1, tq, H) output rows for this q tile.
    """
    qi = pl.program_id(1)
    H = head_size
    cdt = compute_dtype

    x_all = x_ref[0].astype(cdt)           # (T, C) MXU operand dtype
    w = w_ref[...].astype(cdt)             # (C, 3H)

    # ---- fused projections (f32 accumulation on the MXU) -------------------
    # q only for this tile's rows; k/v for the whole resident sequence.
    if n_q == 1:
        x_q = x_all
    else:
        start = qi * tq
        if tq % 8 == 0:
            start = pl.multiple_of(start, 8)
        x_q = x_all[pl.ds(start, tq), :]
    q = jnp.dot(x_q, w[:, :H], preferred_element_type=jnp.float32) * scale
    kv = jnp.dot(x_all, w[:, H:], preferred_element_type=jnp.float32)  # (T, 2H)
    k = kv[:, :H]
    v = kv[:, H:]

    # ---- scores: contract head axes directly (no explicit k.T) -------------
    s = lax.dot_general(q.astype(cdt), k.astype(cdt),
                        (((1,), (1,)), ((), ())),
                        preferred_element_type=jnp.float32)            # (tq, T)

    # ---- causal mask, applied exactly once (every row keeps >= 1 column) ---
    t_cols = s.shape[-1]
    row = qi * tq + lax.broadcasted_iota(jnp.int32, (tq, t_cols), 0)
    col = lax.broadcasted_iota(jnp.int32, (tq, t_cols), 1)
    s = jnp.where(col <= row, s, _MASK_VALUE)

    # ---- softmax (f32 stats) + weighted sum of v ----------------------------
    m = jnp.max(s, axis=-1, keepdims=True)
    p = jnp.exp(s - m)
    l = jnp.sum(p, axis=-1, keepdims=True)
    # TODO(synk): training-mode dropout mask on `p` would go here.
    o = jnp.dot(p.astype(cdt), v.astype(cdt),
                preferred_element_type=jnp.float32)                     # (tq, H)
    # Exact divide at the single finalize point (runs once per q tile).
    o_ref[0] = (o / l).astype(o_ref.dtype)


def head_forward(x, wk, wq, wv, *, compute_dtype=None):
    """Single causal self-attention head (eval mode: no dropout).

    x: (B, T, C); wk/wq/wv: (C, H) (torch Linear weights transposed so that
    k = x @ wk).  Returns (B, T, H) in x.dtype.

    compute_dtype: dtype fed to the MXU for all matmuls (accumulation is
    always f32).  None -> x.dtype (exact parity with the f32 PyTorch module);
    jnp.bfloat16 is the recommended perf setting (~3x MXU throughput on v5e,
    full bf16 path on v6e/v7x).
    """
    B, T, C = x.shape
    H = wk.shape[1]
    if compute_dtype is None:
        compute_dtype = x.dtype
    scale = float(H) ** -0.5

    # One fused (C, 3H) weight -> one wide MXU push set instead of 3 narrow ones.
    w_qkv = jnp.concatenate([wq, wk, wv], axis=1)

    tq = _pick_q_tile(T)
    n_q = T // tq

    kern = functools.partial(
        _fused_head_kernel, tq=tq, n_q=n_q, head_size=H, scale=scale,
        compute_dtype=compute_dtype)

    return pl.pallas_call(
        kern,
        out_shape=jax.ShapeDtypeStruct((B, T, H), x.dtype),
        grid_spec=pltpu.PrefetchScalarGridSpec(
            num_scalar_prefetch=0,
            grid=(B, n_q),
            in_specs=[
                # Full sequence of x per batch element; block index does not
                # depend on the q-tile axis, so it is DMA'd once per batch
                # element and reused across q tiles.
                pl.BlockSpec((1, T, C), lambda b, i: (b, 0, 0)),
                # Fused QKV weight, resident for the whole grid.
                pl.BlockSpec((C, 3 * H), lambda b, i: (0, 0)),
            ],
            out_specs=pl.BlockSpec((1, tq, H), lambda b, i: (b, i, 0)),
        ),
        compiler_params=pltpu.CompilerParams(
            # Both axes independent -> shards across v7x's two TensorCores.
            dimension_semantics=("parallel", "parallel"),
            # KiB-scale footprint at block_size sizes; raise the scoped limit
            # a little so larger T never hits v5e's 16 MiB default.  32 MiB is
            # within physical VMEM on every generation (v7x: 64 MiB).
            vmem_limit_bytes=32 * 1024 * 1024,
        ),
    )(x, w_qkv)


def _reference(x, wk, wq, wv):
    """Pure-JAX reference matching the PyTorch forward (eval mode)."""
    k = x @ wk
    q = x @ wq
    v = x @ wv
    T = x.shape[1]
    H = wk.shape[1]
    wei = (q @ jnp.swapaxes(k, -2, -1)) * (H ** -0.5)
    tril = jnp.tril(jnp.ones((T, T), dtype=bool))
    wei = jnp.where(tril, wei, -jnp.inf)
    wei = jax.nn.softmax(wei, axis=-1)
    return wei @ v


if __name__ == "__main__":
    # Shapes consistent with the module:
    # batch=2, T = block_size = 8, n_embd=32, head_size=16
    B, T, C, H = 2, 8, 32, 16

    key = jax.random.PRNGKey(0)
    kx, kk, kq, kv = jax.random.split(key, 4)

    x = jax.random.normal(kx, (B, T, C), dtype=jnp.float32)
    # deterministic "Linear(n_embd, head_size, bias=False)" weights, stored (C, H)
    wk = jax.random.normal(kk, (C, H), dtype=jnp.float32) * (C ** -0.5)
    wq = jax.random.normal(kq, (C, H), dtype=jnp.float32) * (C ** -0.5)
    wv = jax.random.normal(kv, (C, H), dtype=jnp.float32) * (C ** -0.5)

    ref = _reference(x, wk, wq, wv)

    # f32 compute path: parity with the PyTorch module (residual tolerance
    # covers XLA's default matmul precision in the jnp reference).
    out = jax.block_until_ready(head_forward(x, wk, wq, wv))
    assert out.shape == (B, T, H)
    assert jnp.allclose(out, ref, atol=5e-3, rtol=5e-3), "f32 mismatch vs reference"

    # bf16 MXU-operand path (perf setting from the review): identical
    # algorithm with f32 accumulation/softmax, so only bf16 operand rounding
    # separates it from the f32 reference (typical |err| ~ 1e-2 at these
    # shapes).  Loose sanity bound -- tight parity is the f32 check above.
    out_bf16 = jax.block_until_ready(
        head_forward(x, wk, wq, wv, compute_dtype=jnp.bfloat16))
    assert out_bf16.shape == (B, T, H)
    assert bool(jnp.all(jnp.isfinite(out_bf16)))
    assert jnp.allclose(out_bf16, ref, atol=2e-1, rtol=2e-1), "bf16 sanity check"

    print("KERNEL_OK")
</pallas_src>

<mosaic_0001>
module attributes {stable_mosaic.version = 11 : i64} {
  func.func @_fused_head_kernel(%arg0: i32, %arg1: i32, %arg2: memref<1x8x32xf32, #tpu.memory_space<vmem>>, %arg3: memref<32x48xf32, #tpu.memory_space<vmem>>, %arg4: memref<1x8x16xf32, #tpu.memory_space<vmem>>) attributes {dimension_semantics = [#tpu.dimension_semantics<parallel>, #tpu.dimension_semantics<parallel>], iteration_bounds = array<i64: 2, 1>, scalar_prefetch = 0 : i64, scratch_operands = 0 : i64, tpu.core_type = #tpu.core_type<tc>, window_params = [{transform_indices = @transform_0, window_bounds = array<i64: 1, 8, 32>}, {pipeline_mode = #tpu.pipeline_mode<synchronous>, transform_indices = @transform_1, window_bounds = array<i64: 32, 48>}, {transform_indices = @transform_2, window_bounds = array<i64: 1, 8, 16>}]} {
    %c0 = arith.constant 0 : index
    %c0_0 = arith.constant 0 : index
    %c0_1 = arith.constant 0 : index
    %0 = vector.load %arg2[%c0, %c0_0, %c0_1] : memref<1x8x32xf32, #tpu.memory_space<vmem>>, vector<1x8x32xf32>
    %1 = vector.shape_cast %0 : vector<1x8x32xf32> to vector<8x32xf32>
    %c0_2 = arith.constant 0 : index
    %c0_3 = arith.constant 0 : index
    %2 = vector.load %arg3[%c0_2, %c0_3] : memref<32x48xf32, #tpu.memory_space<vmem>>, vector<32x48xf32>
    %3 = vector.extract_strided_slice %2 {offsets = [0, 0], sizes = [32, 16], strides = [1, 1]} : vector<32x48xf32> to vector<32x16xf32>
    %cst = arith.constant dense<0.000000e+00> : vector<8x16xf32>
    %4 = tpu.matmul %1, %3, %cst {dimension_numbers = #tpu.dot_dimension_numbers<[1], [0], [0], [1], [0, 0, 1, 1], [], []>} : vector<8x32xf32>, vector<32x16xf32>, vector<8x16xf32> -> vector<8x16xf32>
    %cst_4 = arith.constant 2.500000e-01 : f32
    %5 = vector.broadcast %cst_4 : f32 to vector<8x16xf32>
    %6 = arith.mulf %4, %5 : vector<8x16xf32>
    %7 = vector.extract_strided_slice %2 {offsets = [0, 16], sizes = [32, 32], strides = [1, 1]} : vector<32x48xf32> to vector<32x32xf32>
    %cst_5 = arith.constant dense<0.000000e+00> : vector<8x32xf32>
    %8 = tpu.matmul %1, %7, %cst_5 {dimension_numbers = #tpu.dot_dimension_numbers<[1], [0], [0], [1], [0, 0, 1, 1], [], []>} : vector<8x32xf32>, vector<32x32xf32>, vector<8x32xf32> -> vector<8x32xf32>
    %9 = vector.extract_strided_slice %8 {offsets = [0, 0], sizes = [8, 16], strides = [1, 1]} : vector<8x32xf32> to vector<8x16xf32>
    %10 = vector.extract_strided_slice %8 {offsets = [0, 16], sizes = [8, 16], strides = [1, 1]} : vector<8x32xf32> to vector<8x16xf32>
    %cst_6 = arith.constant dense<0.000000e+00> : vector<8x8xf32>
    %11 = tpu.matmul %6, %9, %cst_6 {dimension_numbers = #tpu.dot_dimension_numbers<[1], [1], [0], [0], [0, 0, 1, 0], [], []>} : vector<8x16xf32>, vector<8x16xf32>, vector<8x8xf32> -> vector<8x8xf32>
    %c8_i32 = arith.constant 8 : i32
    %12 = arith.muli %arg1, %c8_i32 : i32
    %13 = tpu.iota {dimensions = array<i32: 0>} : vector<8x8xi32>
    %14 = vector.broadcast %12 : i32 to vector<8x8xi32>
    %15 = arith.addi %14, %13 : vector<8x8xi32>
    %16 = tpu.iota {dimensions = array<i32: 1>} : vector<8x8xi32>
    %17 = arith.cmpi sle, %16, %15 : vector<8x8xi32>
    %cst_7 = arith.constant -1.000000e+30 : f32
    %18 = vector.broadcast %cst_7 : f32 to vector<8x8xf32>
    %19 = arith.select %17, %11, %18 : vector<8x8xi1>, vector<8x8xf32>
    %cst_8 = arith.constant dense<0xFF800000> : vector<8xf32>
    %20 = vector.multi_reduction <maximumf>, %19, %cst_8 [1] : vector<8x8xf32> to vector<8xf32>
    %21 = vector.shape_cast %20 : vector<8xf32> to vector<8x1xf32>
    %22 = vector.broadcast %21 : vector<8x1xf32> to vector<8x8xf32>
    %23 = arith.subf %19, %22 : vector<8x8xf32>
    %24 = math.exp %23 : vector<8x8xf32>
    %cst_9 = arith.constant dense<0.000000e+00> : vector<8xf32>
    %25 = vector.multi_reduction <add>, %24, %cst_9 [1] : vector<8x8xf32> to vector<8xf32>
    %26 = vector.shape_cast %25 : vector<8xf32> to vector<8x1xf32>
    %cst_10 = arith.constant dense<0.000000e+00> : vector<8x16xf32>
    %27 = tpu.matmul %24, %10, %cst_10 {dimension_numbers = #tpu.dot_dimension_numbers<[1], [0], [0], [1], [0, 0, 1, 1], [], []>} : vector<8x8xf32>, vector<8x16xf32>, vector<8x16xf32> -> vector<8x16xf32>
    %28 = vector.broadcast %26 : vector<8x1xf32> to vector<8x16xf32>
    %29 = arith.divf %27, %28 : vector<8x16xf32>
    %c0_11 = arith.constant 0 : index
    %c0_12 = arith.constant 0 : index
    %c0_13 = arith.constant 0 : index
    %30 = vector.load %arg4[%c0_11, %c0_12, %c0_13] : memref<1x8x16xf32, #tpu.memory_space<vmem>>, vector<1x8x16xf32>
    %31 = vector.shape_cast %30 : vector<1x8x16xf32> to vector<8x16xf32>
    %32 = vector.shape_cast %29 : vector<8x16xf32> to vector<1x8x16xf32>
    tpu.vector_store %arg4[%c0_11, %c0_12, %c0_13], %32 {strides = array<i32>} : memref<1x8x16xf32, #tpu.memory_space<vmem>>, vector<1x8x16xf32>,
    return
  }
  func.func @transform_0(%arg0: i32, %arg1: i32) -> (i32, i32, i32) {
    %c0_i32 = arith.constant 0 : i32
    %c0_i32_0 = arith.constant 0 : i32
    %c0_i32_1 = arith.constant 0 : i32
    return %arg0, %c0_i32, %c0_i32_0 : i32, i32, i32
  }
  func.func @transform_1(%arg0: i32, %arg1: i32) -> (i32, i32) {
    %c0_i32 = arith.constant 0 : i32
    %c0_i32_0 = arith.constant 0 : i32
    %c0_i32_1 = arith.constant 0 : i32
    return %c0_i32, %c0_i32_0 : i32, i32
  }
  func.func @transform_2(%arg0: i32, %arg1: i32) -> (i32, i32, i32) {
    %c0_i32 = arith.constant 0 : i32
    %c0_i32_0 = arith.constant 0 : i32
    return %arg0, %arg1, %c0_i32 : i32, i32, i32
  }
}

</mosaic_0001>

<llo_original>
// kernel: tpu_custom_call.1
$region0: #{tpu_custom_call.1}
  #allocation0 [shape = 'u32[]', space=smem, size = 0x4, offset = 0x4, fixed_abs, tag = 'smem constant byte address 0x4 - core index']
  #allocation1 [shape = 'u32[144,128]{1,0:T(1,128)}', space=vmem, size = 0x12000, scoped, tag = 'internal scratch']
  %s0 = inlined_call_operand.hbm [shape: f32[2,8,32], index: 0, kind: input, shape index: {}]
  %s1 = inlined_call_operand.hbm [shape: f32[32,48], index: 1, kind: input, shape index: {}]
  %s2 = inlined_call_operand.hbm [shape: f32[2,8,16], index: 2, kind: output, shape index: {}]
  %s3 = sld [smem:[#allocation0]]
  $region49: #{tpu_custom_call.1} parent=0
    _
  %s5 = ssub.s32 1, %s3
  %s6 = scalar_select 0, %s5, %s3
  $region1: #{tpu_custom_call.1} parent=0
    #allocation2 [shape = 'u8[8192]{0}', space=vmem, size = 0x2000, scoped, tag = 'input window, operand 0']
    #allocation3 [shape = 's32[2]{0}', space=sflag, size = 0x8, scoped, tag = 'scoped memory for tpu_custom_call.1']
    #allocation4 [shape = 's32[2]{0}', space=sflag, size = 0x8, scoped, tag = 'scoped memory for tpu_custom_call.1']
    #allocation5 [shape = 'u8[16384]{0}', space=vmem, size = 0x4000, scoped, tag = 'input window, operand 1, single buffered']
    #allocation6 [shape = 's32[1]{0}', space=sflag, size = 0x4, scoped, tag = 'scoped memory for tpu_custom_call.1']
    #allocation7 [shape = 'u8[8192]{0}', space=vmem, size = 0x2000, scoped, tag = 'output window, operand 0']
    %7 = vsyncpa [#allocation3], 0
    %s8 = scalar_lea.sflag [#allocation3], 1
    %9 = vsyncpa %s8, 0
    %10 = vsyncpa [#allocation6], 0
    %11 = vsyncpa [#allocation4], 0
    %s12 = scalar_lea.sflag [#allocation4], 1
    %13 = vsyncpa %s12, 0
    loop: start=0, step=1, limit=4
    $region2: #{tpu_custom_call.1} parent=1 // loop_pre_header
      _
    $region3: #{tpu_custom_call.1} parent=1 // loop_header
      %s15 = sphi 0, %s19
      %p16 = scmp.ge.s32.totalorder %s15, 4
      %s22 = sphi 0, %s34
      %s23 = sphi 0, %s30
      %s24 = sphi 0, %s22
      %s25 = sphi 0, %s23
      %s26 = sphi 0, %s24
      %s27 = sphi 0, %s25
      %s37 = sphi 0, %s39
      %s40 = sphi 0, %s37
      %s41 = sphi 0, %s40
      %s57 = sphi 0, %s41
      %s61 = sphi 0, %s61
      %s63 = sphi 0, %s61
      %s64 = sphi 0, %s63
      %s78 = sphi 0, %s64
      %s86 = sphi 0, %s88
      %s89 = sphi 0, %s86
      %s90 = sphi 0, %s89
      %s106 = sphi 0, %s90
    $region4: #{tpu_custom_call.1} parent=1 // loop_header_branch
      %18 = sbr.rel (%p16) target = $region8
    $region5: #{tpu_custom_call.1} parent=1 // loop_body
      %s20 = ssub.s32 %s15, 1
      %s21 = ssub.s32 %s15, 2
      %s28 = sadd.s32 1, %s23
      %p29 = scmp.ge.s32.totalorder %s28, 1
      %s30 = scalar_select %p29, 0, %s28
      %s31 = sadd.s32 1, %s22
      %s32 = scalar_select %p29, %s31, %s22
      %p33 = scmp.ge.s32.totalorder %s32, 2
      %s34 = scalar_select %p33, 0, %s32
      %s35 = ssub.s32 %s22, %s34
      %p36 = scmp.eq.s32.totalorder %s35, 0
      %s38 = sadd.s32 %s37, 1
      %s39 = scalar_select %p36, %s37, %s38
      %p42 = pneg %p36
      %p43 = scmp.eq.s32.totalorder %s15, 1
      %p44 = por %p42, %p43
      %p45 = scmp.ne.s32.totalorder %s37, %s40
      %p46 = scmp.eq.s32.totalorder %s15, 0
      %p47 = por %p45, %p46
      %p48 = scmp.ne.s32.totalorder %s37, %s40
      %p49 = scmp.eq.s32.totalorder %s20, 1
      %p50 = por %p48, %p49
      %p51 = scmp.ne.s32.totalorder %s40, %s41
      %p52 = scmp.eq.s32.totalorder %s20, 0
      %p53 = por %p51, %p52
      %p54 = scmp.ne.s32.totalorder %s40, %s41
      %p55 = scmp.eq.s32.totalorder %s21, 1
      %p56 = por %p54, %p55
      %p58 = scmp.ne.s32.totalorder %s41, %s57
      %p59 = scmp.eq.s32.totalorder %s21, 0
      %p60 = por %p58, %p59
      %s62 = sadd.s32 %s61, 1
      %p65 = scmp.eq.s32.totalorder %s15, 1
      %p66 = scmp.ne.s32.totalorder %s61, %s63
      %p67 = scmp.eq.s32.totalorder %s15, 0
      %p68 = por %p66, %p67
      %p69 = scmp.ne.s32.totalorder %s61, %s63
      %p70 = scmp.eq.s32.totalorder %s20, 1
      %p71 = por %p69, %p70
      %p72 = scmp.ne.s32.totalorder %s63, %s64
      %p73 = scmp.eq.s32.totalorder %s20, 0
      %p74 = por %p72, %p73
      %p75 = scmp.ne.s32.totalorder %s63, %s64
      %p76 = scmp.eq.s32.totalorder %s21, 1
      %p77 = por %p75, %p76
      %p79 = scmp.ne.s32.totalorder %s64, %s78
      %p80 = scmp.eq.s32.totalorder %s21, 0
      %p81 = por %p79, %p80
      %s82 = ssub.s32 %s22, %s34
      %s83 = ssub.s32 %s23, %s30
      %s84 = sor.u32 %s82, %s83
      %p85 = scmp.eq.s32.totalorder %s84, 0
      %s87 = sadd.s32 %s86, 1
      %s88 = scalar_select %p85, %s86, %s87
      %p91 = pneg %p85
      %p92 = scmp.eq.s32.totalorder %s15, 1
      %p93 = por %p91, %p92
      %p94 = scmp.ne.s32.totalorder %s86, %s89
      %p95 = scmp.eq.s32.totalorder %s15, 0
      %p96 = por %p94, %p95
      %p97 = scmp.ne.s32.totalorder %s86, %s89
      %p98 = scmp.eq.s32.totalorder %s20, 1
      %p99 = por %p97, %p98
      %p100 = scmp.ne.s32.totalorder %s89, %s90
      %p101 = scmp.eq.s32.totalorder %s20, 0
      %p102 = por %p100, %p101
      %p103 = scmp.ne.s32.totalorder %s89, %s90
      %p104 = scmp.eq.s32.totalorder %s21, 1
      %p105 = por %p103, %p104
      %p107 = scmp.ne.s32.totalorder %s90, %s106
      %p108 = scmp.eq.s32.totalorder %s21, 0
      %p109 = por %p107, %p108
      %p110 = scmp.le.s32.totalorder 1, %s15
      %p111 = scmp.lt.s32.totalorder %s15, 3
      %p112 = pnand %p110, %p111
      %p113 = pneg %p112
      // Predicated region
      $region9: #{tpu_custom_call.1} parent=5 // pred_check
        _
      $region10: #{tpu_custom_call.1} parent=5 // pred_check_branch
        %115 = sbr.rel (%p112) target = $region12
      $region11: #{tpu_custom_call.1} parent=5 // pred_region
        %s116 = ssub.s32 %s15, 1
        // Predicated region
        $region13: #{tpu_custom_call.1} parent=11 // pred_check
          %p117 = pneg %p74
        $region14: #{tpu_custom_call.1} parent=11 // pred_check_branch
          %119 = sbr.rel (%p117) target = $region16
        $region15: #{tpu_custom_call.1} parent=11 // pred_region
          %s121 = ssub.s32 512, 512
          %122 = vsyncadd [#allocation6], %s121
          %s123 = sshll.u32 [#allocation5], 4
          %s124 = int_to_ptr.vmem [resolvable:$true] %s123
          %129 = dma.hbm_to_vmem [thread:$0]  %s1, 512, %s124, [#allocation6], 128, 128, 8
        $region16: #{tpu_custom_call.1} parent=11 // pred_fallthru
          _
      $region12: #{tpu_custom_call.1} parent=5 // pred_fallthru
        _
      %p130 = scmp.lt.s32.totalorder %s15, 2
      // Predicated region
      $region17: #{tpu_custom_call.1} parent=5 // pred_check
        %p131 = pneg %p130
      $region18: #{tpu_custom_call.1} parent=5 // pred_check_branch
        %133 = sbr.rel (%p131) target = $region20
      $region19: #{tpu_custom_call.1} parent=5 // pred_region
        // Predicated region
        $region21: #{tpu_custom_call.1} parent=19 // pred_check
          %p134 = pneg %p47
        $region22: #{tpu_custom_call.1} parent=19 // pred_check_branch
          %136 = sbr.rel (%p134) target = $region24
        $region23: #{tpu_custom_call.1} parent=19 // pred_region
          %s137 = sand.u32 %s37, 1
          %s138 = scalar_lea.sflag [#allocation3], %s137
          %s139 = sand.u32 %s37, 1
          %s140 = smul.addr %s139, 8
          %s141 = scalar_lea.vmem [#allocation2], %s140
          %s143 = ssub.s32 128, 128
          %144 = vsyncadd %s138, %s143
          %s145 = smul.addr %s22, 128
          %s146 = scalar_lea.hbm %s0, %s145
          %s148 = sshll.u32 %s141, 4
          %s149 = int_to_ptr.vmem [resolvable:$true] %s148
          %151 = dma.hbm_to_vmem [thread:$0]  %s146, 128, %s149, %s138
        $region24: #{tpu_custom_call.1} parent=19 // pred_fallthru
          _
      $region20: #{tpu_custom_call.1} parent=5 // pred_fallthru
        _
      %p152 = scmp.le.s32.totalorder 1, %s15
      %p153 = scmp.lt.s32.totalorder %s15, 3
      %p154 = pnand %p152, %p153
      %p155 = pneg %p154
      // Predicated region
      $region25: #{tpu_custom_call.1} parent=5 // pred_check
        _
      $region26: #{tpu_custom_call.1} parent=5 // pred_check_branch
        %157 = sbr.rel (%p154) target = $region28
      $region27: #{tpu_custom_call.1} parent=5 // pred_region
        %s158 = ssub.s32 %s15, 1
        %s159 = sand.u32 %s40, 1
        %s160 = scalar_lea.sflag [#allocation3], %s159
        %s161 = sand.u32 %s40, 1
        %s162 = smul.addr %s161, 8
        %s163 = scalar_lea.vmem [#allocation2], %s162
        // Predicated region
        $region29: #{tpu_custom_call.1} parent=27 // pred_check
          %p164 = pneg %p53
        $region30: #{tpu_custom_call.1} parent=27 // pred_check_branch
          %166 = sbr.rel (%p164) target = $region32
        $region31: #{tpu_custom_call.1} parent=27 // pred_region
          %167 = dma.done %s160, 128
        $region32: #{tpu_custom_call.1} parent=27 // pred_fallthru
          _
        // Predicated region
        $region33: #{tpu_custom_call.1} parent=27 // pred_check
          %p168 = pneg %p74
        $region34: #{tpu_custom_call.1} parent=27 // pred_check_branch
          %170 = sbr.rel (%p168) target = $region36
        $region35: #{tpu_custom_call.1} parent=27 // pred_region
          %171 = dma.done [#allocation6], 512
        $region36: #{tpu_custom_call.1} parent=27 // pred_fallthru
          _
        %s172 = sand.u32 %s40, 1
        %s173 = scalar_lea.sflag [#allocation3], %s172
        %s174 = sand.u32 %s40, 1
        %s175 = smul.addr %s174, 8
        %s176 = scalar_lea.vmem [#allocation2], %s175
        %p177 = pneg %p53
        %p178 = pneg %p50
        %p179 = pneg %p74
        %p180 = pneg %p71
        %p181 = pneg %p102
        %p182 = pneg %p99
        %s183 = sand.u32 %s89, 1
        %s184 = scalar_lea.sflag [#allocation4], %s183
        %s185 = sand.u32 %s89, 1
        %s186 = smul.addr %s185, 8
        %s187 = scalar_lea.vmem [#allocation7], %s186
        %v188 = vld [vmem:[%s163] sm:$0xff]
        %v189 = vld [vmem:[#allocation5] sm:$0xff]
        %v190 = vld [vmem:[#allocation5 + $0x8] sm:$0xff]
        %v191 = vld [vmem:[#allocation5 + $0x10] sm:$0xff]
        %v192 = vld [vmem:[#allocation5 + $0x18] sm:$0xff]
        %vm193 = vcmask 261120
        %v195 = vsel %vm193, %v188, 0
        %197 = vmatprep.subr.mxu0 0.0
        %198 = vmatpush1.msra.mxu0 0.0
        %199 = vmatprep.subr.mxu0 0.0
        %200 = vmatpush1.msra.mxu0 0.0
        %201 = vmatprep.subr.mxu0 0.0
        %202 = vmatpush1.msra.mxu0 0.0
        %203 = vmatprep.subr.mxu0 0.0
        %204 = vmatpush1.msra.mxu0 0.0
        %205 = vmatprep.subr.mxu0 0.0
        %206 = vmatpush1.msra.mxu0 0.0
        %207 = vmatprep.subr.mxu0 0.0
        %208 = vmatpush1.msra.mxu0 0.0
        %209 = vmatprep.subr.mxu0 0.0
        %210 = vmatpush1.msra.mxu0 0.0
        %211 = vmatprep.subr.mxu0 0.0
        %212 = vmatpush1.msra.mxu0 0.0
        %213 = vmatprep.subr.mxu0 0.0
        %214 = vmatpush1.msra.mxu0 0.0
        %215 = vmatprep.subr.mxu0 0.0
        %216 = vmatpush1.msra.mxu0 0.0
        %217 = vmatprep.subr.mxu0 0.0
        %218 = vmatpush1.msra.mxu0 0.0
        %219 = vmatprep.subr.mxu0 0.0
        %220 = vmatpush1.msra.mxu0 0.0
        %221 = vmatprep.subr.mxu0 0.0
        %222 = vmatpush1.msra.mxu0 %v192
        %223 = vmatprep.subr.mxu0 0.0
        %224 = vmatpush1.msra.mxu0 %v191
        %225 = vmatprep.subr.mxu0 0.0
        %226 = vmatpush1.msra.mxu0 %v190
        %227 = vmatprep.subr.mxu0 0.0
        %228 = vmatpush1.msra.mxu0 %v189
        %229 = vmatprep.subr.mxu0 0.0
        %230 = vmatpush2.msra.mxu0 0.0
        %231 = vmatprep.subr.mxu0 0.0
        %232 = vmatpush2.msra.mxu0 0.0
        %233 = vmatprep.subr.mxu0 0.0
        %234 = vmatpush2.msra.mxu0 0.0
        %235 = vmatprep.subr.mxu0 0.0
        %236 = vmatpush2.msra.mxu0 0.0
        %237 = vmatprep.subr.mxu0 0.0
        %238 = vmatpush2.msra.mxu0 0.0
        %239 = vmatprep.subr.mxu0 0.0
        %240 = vmatpush2.msra.mxu0 0.0
        %241 = vmatprep.subr.mxu0 0.0
        %242 = vmatpush2.msra.mxu0 0.0
        %243 = vmatprep.subr.mxu0 0.0
        %244 = vmatpush2.msra.mxu0 0.0
        %245 = vmatprep.subr.mxu0 0.0
        %246 = vmatpush2.msra.mxu0 0.0
        %247 = vmatprep.subr.mxu0 0.0
        %248 = vmatpush2.msra.mxu0 0.0
        %249 = vmatprep.subr.mxu0 0.0
        %250 = vmatpush2.msra.mxu0 0.0
        %251 = vmatprep.subr.mxu0 0.0
        %252 = vmatpush2.msra.mxu0 0.0
        %253 = vmatprep.subr.mxu0 0.0
        %254 = vmatpush2.msra.mxu0 0.0
        %255 = vmatprep.subr.mxu0 0.0
        %256 = vmatpush2.msra.mxu0 0.0
        %257 = vmatprep.subr.mxu0 0.0
        %258 = vmatpush2.msra.mxu0 0.0
        %259 = vmatprep.subr.mxu0 0.0
        %260 = vmatpush2.msra.mxu0 0.0
        %261 = vmatprep.mubr.f32.mxu0 0.0
        %262 = vmatmul.mubr.f32.gmra.mxu0 %v195
        %v263 = vpop.f32.mrf.mxu0
        %v264 = vadd.f32 0.0, %v263
        %v265 = vpop.f32.mrf.mxu0
        %266 = vdwg.mxu0
        %v267 = vmul.f32 %v264, 0.25
        %272 = vrot.lane.b32.xlu0 %v189, 112
        %v273 = vpop.permute.xlu0 %272
        %274 = vrot.lane.b32.xlu0 %v190, 112
        %v275 = vpop.permute.xlu0 %274
        %276 = vrot.lane.b32.xlu0 %v191, 112
        %v277 = vpop.permute.xlu0 %276
        %278 = vrot.lane.b32.xlu0 %v192, 112
        %v279 = vpop.permute.xlu0 %278
        %284 = vmatprep.subr.mxu0 0.0
        %285 = vmatpush1.msra.mxu0 0.0
        %286 = vmatprep.subr.mxu0 0.0
        %287 = vmatpush1.msra.mxu0 0.0
        %288 = vmatprep.subr.mxu0 0.0
        %289 = vmatpush1.msra.mxu0 0.0
        %290 = vmatprep.subr.mxu0 0.0
        %291 = vmatpush1.msra.mxu0 0.0
        %292 = vmatprep.subr.mxu0 0.0
        %293 = vmatpush1.msra.mxu0 0.0
        %294 = vmatprep.subr.mxu0 0.0
        %295 = vmatpush1.msra.mxu0 0.0
        %296 = vmatprep.subr.mxu0 0.0
        %297 = vmatpush1.msra.mxu0 0.0
        %298 = vmatprep.subr.mxu0 0.0
        %299 = vmatpush1.msra.mxu0 0.0
        %300 = vmatprep.subr.mxu0 0.0
        %301 = vmatpush1.msra.mxu0 0.0
        %302 = vmatprep.subr.mxu0 0.0
        %303 = vmatpush1.msra.mxu0 0.0
        %304 = vmatprep.subr.mxu0 0.0
        %305 = vmatpush1.msra.mxu0 0.0
        %306 = vmatprep.subr.mxu0 0.0
        %307 = vmatpush1.msra.mxu0 0.0
        %308 = vmatprep.subr.mxu0 0.0
        %309 = vmatpush1.msra.mxu0 %v279
        %310 = vmatprep.subr.mxu0 0.0
        %311 = vmatpush1.msra.mxu0 %v277
        %312 = vmatprep.subr.mxu0 0.0
        %313 = vmatpush1.msra.mxu0 %v275
        %314 = vmatprep.subr.mxu0 0.0
        %315 = vmatpush1.msra.mxu0 %v273
        %316 = vmatprep.subr.mxu0 0.0
        %317 = vmatpush2.msra.mxu0 0.0
        %318 = vmatprep.subr.mxu0 0.0
        %319 = vmatpush2.msra.mxu0 0.0
        %320 = vmatprep.subr.mxu0 0.0
        %321 = vmatpush2.msra.mxu0 0.0
        %322 = vmatprep.subr.mxu0 0.0
        %323 = vmatpush2.msra.mxu0 0.0
        %324 = vmatprep.subr.mxu0 0.0
        %325 = vmatpush2.msra.mxu0 0.0
        %326 = vmatprep.subr.mxu0 0.0
        %327 = vmatpush2.msra.mxu0 0.0
        %328 = vmatprep.subr.mxu0 0.0
        %329 = vmatpush2.msra.mxu0 0.0
        %330 = vmatprep.subr.mxu0 0.0
        %331 = vmatpush2.msra.mxu0 0.0
        %332 = vmatprep.subr.mxu0 0.0
        %333 = vmatpush2.msra.mxu0 0.0
        %334 = vmatprep.subr.mxu0 0.0
        %335 = vmatpush2.msra.mxu0 0.0
        %336 = vmatprep.subr.mxu0 0.0
        %337 = vmatpush2.msra.mxu0 0.0
        %338 = vmatprep.subr.mxu0 0.0
        %339 = vmatpush2.msra.mxu0 0.0
        %340 = vmatprep.subr.mxu0 0.0
        %341 = vmatpush2.msra.mxu0 0.0
        %342 = vmatprep.subr.mxu0 0.0
        %343 = vmatpush2.msra.mxu0 0.0
        %344 = vmatprep.subr.mxu0 0.0
        %345 = vmatpush2.msra.mxu0 0.0
        %346 = vmatprep.subr.mxu0 0.0
        %347 = vmatpush2.msra.mxu0 0.0
        %348 = vmatprep.mubr.f32.mxu0 0.0
        %349 = vmatmul.mubr.f32.gmra.mxu0 %v195
        %v350 = vpop.f32.mrf.mxu0
        %v351 = vadd.f32 0.0, %v350
        %v352 = vpop.f32.mrf.mxu0
        %353 = vdwg.mxu0
        %vm354 = vcmask 130048
        %v356 = vsel %vm354, %v267, 0
        %v359 = vsel %vm354, %v351, 0
        %361 = vmatprep.subr.mxu0 0.0
        %362 = vmatpush1.xpose.msra.mxu0 0.0
        %363 = vmatprep.subr.mxu0 0.0
        %364 = vmatpush1.xpose.msra.mxu0 0.0
        %365 = vmatprep.subr.mxu0 0.0
        %366 = vmatpush1.xpose.msra.mxu0 0.0
        %367 = vmatprep.subr.mxu0 0.0
        %368 = vmatpush1.xpose.msra.mxu0 0.0
        %369 = vmatprep.subr.mxu0 0.0
        %370 = vmatpush1.xpose.msra.mxu0 0.0
        %371 = vmatprep.subr.mxu0 0.0
        %372 = vmatpush1.xpose.msra.mxu0 0.0
        %373 = vmatprep.subr.mxu0 0.0
        %374 = vmatpush1.xpose.msra.mxu0 0.0
        %375 = vmatprep.subr.mxu0 0.0
        %376 = vmatpush1.xpose.msra.mxu0 0.0
        %377 = vmatprep.subr.mxu0 0.0
        %378 = vmatpush1.xpose.msra.mxu0 0.0
        %379 = vmatprep.subr.mxu0 0.0
        %380 = vmatpush1.xpose.msra.mxu0 0.0
        %381 = vmatprep.subr.mxu0 0.0
        %382 = vmatpush1.xpose.msra.mxu0 0.0
        %383 = vmatprep.subr.mxu0 0.0
        %384 = vmatpush1.xpose.msra.mxu0 0.0
        %385 = vmatprep.subr.mxu0 0.0
        %386 = vmatpush1.xpose.msra.mxu0 0.0
        %387 = vmatprep.subr.mxu0 0.0
        %388 = vmatpush1.xpose.msra.mxu0 0.0
        %389 = vmatprep.subr.mxu0 0.0
        %390 = vmatpush1.xpose.msra.mxu0 0.0
        %391 = vmatprep.subr.mxu0 0.0
        %392 = vmatpush1.xpose.msra.mxu0 %v359
        %393 = vmatprep.subr.mxu0 0.0
        %394 = vmatpush2.xpose.msra.mxu0 0.0
        %395 = vmatprep.subr.mxu0 0.0
        %396 = vmatpush2.xpose.msra.mxu0 0.0
        %397 = vmatprep.subr.mxu0 0.0
        %398 = vmatpush2.xpose.msra.mxu0 0.0
        %399 = vmatprep.subr.mxu0 0.0
        %400 = vmatpush2.xpose.msra.mxu0 0.0
        %401 = vmatprep.subr.mxu0 0.0
        %402 = vmatpush2.xpose.msra.mxu0 0.0
        %403 = vmatprep.subr.mxu0 0.0
        %404 = vmatpush2.xpose.msra.mxu0 0.0
        %405 = vmatprep.subr.mxu0 0.0
        %406 = vmatpush2.xpose.msra.mxu0 0.0
        %407 = vmatprep.subr.mxu0 0.0
        %408 = vmatpush2.xpose.msra.mxu0 0.0
        %409 = vmatprep.subr.mxu0 0.0
        %410 = vmatpush2.xpose.msra.mxu0 0.0
        %411 = vmatprep.subr.mxu0 0.0
        %412 = vmatpush2.xpose.msra.mxu0 0.0
        %413 = vmatprep.subr.mxu0 0.0
        %414 = vmatpush2.xpose.msra.mxu0 0.0
        %415 = vmatprep.subr.mxu0 0.0
        %416 = vmatpush2.xpose.msra.mxu0 0.0
        %417 = vmatprep.subr.mxu0 0.0
        %418 = vmatpush2.xpose.msra.mxu0 0.0
        %419 = vmatprep.subr.mxu0 0.0
        %420 = vmatpush2.xpose.msra.mxu0 0.0
        %421 = vmatprep.subr.mxu0 0.0
        %422 = vmatpush2.xpose.msra.mxu0 0.0
        %423 = vmatprep.subr.mxu0 0.0
        %424 = vmatpush2.xpose.msra.mxu0 0.0
        %425 = vmatprep.mubr.f32.mxu0 0.0
        %426 = vmatmul.mubr.f32.gmra.mxu0 %v356
        %v427 = vpop.f32.mrf.mxu0
        %v428 = vadd.f32 0.0, %v427
        %v429 = vpop.f32.mrf.mxu0
        %430 = vdwg.mxu0
        %s431 = smul.u32 %s25, 8
        %v432 = vlaneseq
        %v433 = vshrl.u32 %v432, 7
        %v434 = vstv %s431
        %v435 = vadd.s32 %v434, %v433
        %v436 = vlaneseq
        %v437 = vand.u32 %v436, 127
        %vm438 = vcmp.le.s32.totalorder %v437, %v435
        %v439 = vsel %vm438, %v428, -1e+30
        %vm440 = vcmask 64512
        %v441 = vsel %vm440, %v439, -inf
        %442 = vmax.xlane.f32.xlu0 %v441
        %v443 = vpop.xlane.xlu0 %442
        %v444 = vsub.f32 %v439, %v443
        %v445 = vmul.f32 %v444, 1.442695
        %v446 = vpow.pop %v445
        %v447 = vsel %vm440, %v446, 0.0
        %448 = vadd.xlane.f32.xlu0 %v447
        %v449 = vpop.xlane.xlu0 %448
        %450 = vrot.lane.b32.xlu0 %v351, 112
        %v451 = vpop.permute.xlu0 %450
        %v454 = vsel %vm440, %v446, 0
        %456 = vmatprep.subr.mxu0 0.0
        %457 = vmatpush1.msra.mxu0 0.0
        %458 = vmatprep.subr.mxu0 0.0
        %459 = vmatpush1.msra.mxu0 0.0
        %460 = vmatprep.subr.mxu0 0.0
        %461 = vmatpush1.msra.mxu0 0.0
        %462 = vmatprep.subr.mxu0 0.0
        %463 = vmatpush1.msra.mxu0 0.0
        %464 = vmatprep.subr.mxu0 0.0
        %465 = vmatpush1.msra.mxu0 0.0
        %466 = vmatprep.subr.mxu0 0.0
        %467 = vmatpush1.msra.mxu0 0.0
        %468 = vmatprep.subr.mxu0 0.0
        %469 = vmatpush1.msra.mxu0 0.0
        %470 = vmatprep.subr.mxu0 0.0
        %471 = vmatpush1.msra.mxu0 0.0
        %472 = vmatprep.subr.mxu0 0.0
        %473 = vmatpush1.msra.mxu0 0.0
        %474 = vmatprep.subr.mxu0 0.0
        %475 = vmatpush1.msra.mxu0 0.0
        %476 = vmatprep.subr.mxu0 0.0
        %477 = vmatpush1.msra.mxu0 0.0
        %478 = vmatprep.subr.mxu0 0.0
        %479 = vmatpush1.msra.mxu0 0.0
        %480 = vmatprep.subr.mxu0 0.0
        %481 = vmatpush1.msra.mxu0 0.0
        %482 = vmatprep.subr.mxu0 0.0
        %483 = vmatpush1.msra.mxu0 0.0
        %484 = vmatprep.subr.mxu0 0.0
        %485 = vmatpush1.msra.mxu0 0.0
        %486 = vmatprep.subr.mxu0 0.0
        %487 = vmatpush1.msra.mxu0 %v451
        %488 = vmatprep.subr.mxu0 0.0
        %489 = vmatpush2.msra.mxu0 0.0
        %490 = vmatprep.subr.mxu0 0.0
        %491 = vmatpush2.msra.mxu0 0.0
        %492 = vmatprep.subr.mxu0 0.0
        %493 = vmatpush2.msra.mxu0 0.0
        %494 = vmatprep.subr.mxu0 0.0
        %495 = vmatpush2.msra.mxu0 0.0
        %496 = vmatprep.subr.mxu0 0.0
        %497 = vmatpush2.msra.mxu0 0.0
        %498 = vmatprep.subr.mxu0 0.0
        %499 = vmatpush2.msra.mxu0 0.0
        %500 = vmatprep.subr.mxu0 0.0
        %501 = vmatpush2.msra.mxu0 0.0
        %502 = vmatprep.subr.mxu0 0.0
        %503 = vmatpush2.msra.mxu0 0.0
        %504 = vmatprep.subr.mxu0 0.0
        %505 = vmatpush2.msra.mxu0 0.0
        %506 = vmatprep.subr.mxu0 0.0
        %507 = vmatpush2.msra.mxu0 0.0
        %508 = vmatprep.subr.mxu0 0.0
        %509 = vmatpush2.msra.mxu0 0.0
        %510 = vmatprep.subr.mxu0 0.0
        %511 = vmatpush2.msra.mxu0 0.0
        %512 = vmatprep.subr.mxu0 0.0
        %513 = vmatpush2.msra.mxu0 0.0
        %514 = vmatprep.subr.mxu0 0.0
        %515 = vmatpush2.msra.mxu0 0.0
        %516 = vmatprep.subr.mxu0 0.0
        %517 = vmatpush2.msra.mxu0 0.0
        %518 = vmatprep.subr.mxu0 0.0
        %519 = vmatpush2.msra.mxu0 0.0
        %520 = vmatprep.mubr.f32.mxu0 0.0
        %521 = vmatmul.mubr.f32.gmra.mxu0 %v454
        %v522 = vpop.f32.mrf.mxu0
        %v523 = vadd.f32 0.0, %v522
        %v524 = vpop.f32.mrf.mxu0
        %525 = vdwg.mxu0
        %v526 = vrcp.pop %v449
        %v527 = vmul.f32 %v523, %v526
        %528 = vst.msk [vmem:[%s187] sm:$0xff] %vm354, %v527
        %s529 = sand.u32 %s89, 1
        %s530 = scalar_lea.sflag [#allocation4], %s529
        %s531 = sand.u32 %s89, 1
        %s532 = smul.addr %s531, 8
        %s533 = scalar_lea.vmem [#allocation7], %s532
        // Predicated region
        $region37: #{tpu_custom_call.1} parent=27 // pred_check
          %p534 = pneg %p99
        $region38: #{tpu_custom_call.1} parent=27 // pred_check_branch
          %536 = sbr.rel (%p534) target = $region40
        $region39: #{tpu_custom_call.1} parent=27 // pred_region
          %s538 = ssub.s32 128, 128
          %539 = vsyncadd %s530, %s538
          %s540 = sadd.s32 %s25, %s24
          %s541 = smul.addr %s540, 128
          %s542 = scalar_lea.hbm %s2, %s541
          %s544 = sshll.u32 %s533, 4
          %s545 = int_to_ptr.vmem [resolvable:$true] %s544
          %547 = dma.vmem_to_hbm [thread:$0]  %s545, 128, %s542, %s530
        $region40: #{tpu_custom_call.1} parent=27 // pred_fallthru
          _
      $region28: #{tpu_custom_call.1} parent=5 // pred_fallthru
        _
      %p548 = scmp.le.s32.totalorder 2, %s15
      // Predicated region
      $region41: #{tpu_custom_call.1} parent=5 // pred_check
        %p549 = pneg %p548
      $region42: #{tpu_custom_call.1} parent=5 // pred_check_branch
        %551 = sbr.rel (%p549) target = $region44
      $region43: #{tpu_custom_call.1} parent=5 // pred_region
        %s552 = ssub.s32 %s15, 2
        // Predicated region
        $region45: #{tpu_custom_call.1} parent=43 // pred_check
          %p553 = pneg %p105
        $region46: #{tpu_custom_call.1} parent=43 // pred_check_branch
          %555 = sbr.rel (%p553) target = $region48
        $region47: #{tpu_custom_call.1} parent=43 // pred_region
          %s556 = sand.u32 %s90, 1
          %s557 = scalar_lea.sflag [#allocation4], %s556
          %s558 = sand.u32 %s90, 1
          %s559 = smul.addr %s558, 8
          %s560 = scalar_lea.vmem [#allocation7], %s559
          %561 = dma.done %s557, 128
        $region48: #{tpu_custom_call.1} parent=43 // pred_fallthru
          _
      $region44: #{tpu_custom_call.1} parent=5 // pred_fallthru
        _
    $region6: #{tpu_custom_call.1} parent=1 // loop_footer
      %s19 = sadd.s32 1, %s15
    $region7: #{tpu_custom_call.1} parent=1 // loop_footer_branch
      %14 = sbr.rel target = $region3
    $region8: #{tpu_custom_call.1} parent=1 // loop_exit
      _
    %562 = vsyncpa [#allocation3], 1
    %s563 = scalar_lea.sflag [#allocation3], 1
    %564 = vsyncpa %s563, 1
    %565 = vsyncpa [#allocation6], 1
    %566 = vsyncpa [#allocation4], 1
    %s567 = scalar_lea.sflag [#allocation4], 1
    %568 = vsyncpa %s567, 1

</llo_original>
